<compile_context>
chip_gen: v7x
topology: tpu7x:2x2x1
jax: 0.10.0
libtpu: 0.0.40
codegen_flags: <defaults>
</compile_context>

<pallas_src>
import functools

import numpy as np
import jax
import jax.numpy as jnp
from jax.experimental import pallas as pl
from jax.experimental.pallas import tpu as pltpu

BN_EPS = 1e-5


def _conv_pass1_kernel(x_ref, w_ref, y_ref, s_ref, *, K, T_H, stride):
    """Conv matmul for one tile + per-tile BatchNorm partial sums.

    x_ref: [1, band_rows, Wp*Cin]  padded input row-band for this tile
    w_ref: [K, Wp*Cin, Wo*Cout]    block-Toeplitz weights (kw folded in)
    y_ref: [1, T_H, Wo*Cout]       pre-BN conv output tile (f32)
    s_ref: [1, 2, Wo*Cout]         per-tile [sum, sum_sq] (still wo-stratified)
    """
    xb = x_ref[0]                                  # [band_rows, Wp*Cin]
    wp_cin = xb.shape[1]
    acc = None
    for kh in range(K):                            # static unroll: K MXU matmuls
        xs = jax.lax.slice(xb, (kh, 0),
                           (kh + (T_H - 1) * stride + 1, wp_cin),
                           (stride, 1))            # [T_H, Wp*Cin]
        m = jnp.dot(xs, w_ref[kh], preferred_element_type=jnp.float32)
        acc = m if acc is None else acc + m
    y_ref[0] = acc.astype(y_ref.dtype)
    # Partial BN statistics: reduce over rows (sublane axis) only; the lane axis
    # stays wo-stratified and is reduced cheaply in the wrapper.
    s0 = jnp.sum(acc, axis=0, keepdims=True)
    s1 = jnp.sum(acc * acc, axis=0, keepdims=True)
    s_ref[0] = jnp.concatenate([s0, s1], axis=0)


def _scale_shift_act_kernel(y_ref, sc_ref, sh_ref, o_ref, *, relu):
    """Fused BN affine (or conv bias) + activation for one tile."""
    y = y_ref[0]                                   # [T_H, Wo*Cout]
    out = y * sc_ref[...] + sh_ref[...]            # sc/sh: [1, Wo*Cout]
    if relu:
        out = jnp.maximum(out, 0.0)
    o_ref[0] = out.astype(o_ref.dtype)


def _pick_tile_h(Ho, Wo, target_rows=1024):
    """Largest divisor of Ho whose tile (T_H*Wo rows) stays near target_rows.

    target_rows ~1024 amortizes the ~0.35us/step grid overhead; shrink toward
    512 on v5e / under v7x's 64 MiB VMEM if the tiles get large.
    """
    best = 1
    for t in range(1, Ho + 1):
        if Ho % t == 0 and t * Wo <= target_rows:
            best = t
    return best


def conv_forward(x_nchw, weight, bias, gamma, beta, *, stride, padding,
                 bn=True, relu=True, compute_dtype=jnp.float32):
    """Conv2d + BatchNorm2d(training stats) + ReLU, matching the PyTorch Conv."""
    N, Cin, H, W = x_nchw.shape
    Cout, Cin_w, K, K2 = weight.shape
    assert Cin_w == Cin and K == K2
    Ho = (H + 2 * padding - K) // stride + 1
    Wo = (W + 2 * padding - K) // stride + 1
    Hp, Wp = H + 2 * padding, W + 2 * padding
    lane_out = Wo * Cout                      # lane-dense output dim (128 here)

    # ---- glue: NCHW -> NHWC, pad, fold (W, Cin) into the lane dim ------------
    # TODO(synk): keep NHWC end-to-end across adjacent Conv layers and drop the
    # boundary transposes at the model level (each costs an extra HBM pass).
    x = jnp.transpose(x_nchw, (0, 2, 3, 1)).astype(compute_dtype)
    x = jnp.pad(x, ((0, 0), (padding, padding), (padding, padding), (0, 0)))
    x = x.reshape(N, Hp, Wp * Cin)

    # Row-band tiling: each grid step computes T_H output rows of one image from
    # a band of (T_H-1)*stride + K padded input rows (only K-1 halo rows are
    # duplicated -- no K*K im2col blow-up).
    T_H = _pick_tile_h(Ho, Wo)
    n_hb = Ho // T_H
    band_rows = (T_H - 1) * stride + K
    x_bands = jnp.stack(
        [x[:, hb * T_H * stride: hb * T_H * stride + band_rows, :]
         for hb in range(n_hb)], axis=1)                 # [N, n_hb, band, Wp*Cin]
    n_tiles = N * n_hb
    x_bands = x_bands.reshape(n_tiles, band_rows, Wp * Cin)

    # Block-Toeplitz weight: fold kw and the wo output positions into a
    # [Wp*Cin, Wo*Cout] matrix per kh.  Tiny one-time construction.
    wt = jnp.transpose(weight, (2, 3, 1, 0)).astype(compute_dtype)  # [kh,kw,ci,co]
    kw_i, ci_i, wo_i, co_i = np.meshgrid(
        np.arange(K), np.arange(Cin), np.arange(Wo), np.arange(Cout),
        indexing="ij")
    rows = (wo_i * stride + kw_i) * Cin + ci_i
    cols = wo_i * Cout + co_i
    w_toep = jnp.zeros((K, Wp * Cin, lane_out), dtype=compute_dtype)
    w_toep = w_toep.at[:, rows, cols].set(wt[:, kw_i, ci_i, co_i])

    itemsize = jnp.dtype(compute_dtype).itemsize

    # ---- pass 1: conv matmul + per-tile BN partial sums -----------------------
    pass1 = pl.pallas_call(
        functools.partial(_conv_pass1_kernel, K=K, T_H=T_H, stride=stride),
        grid=(n_tiles,),
        in_specs=[
            pl.BlockSpec((1, band_rows, Wp * Cin), lambda i: (i, 0, 0)),
            pl.BlockSpec((K, Wp * Cin, lane_out), lambda i: (0, 0, 0)),
        ],
        out_specs=[
            pl.BlockSpec((1, T_H, lane_out), lambda i: (i, 0, 0)),
            pl.BlockSpec((1, 2, lane_out), lambda i: (i, 0, 0)),
        ],
        out_shape=[
            jax.ShapeDtypeStruct((n_tiles, T_H, lane_out), jnp.float32),
            jax.ShapeDtypeStruct((n_tiles, 2, lane_out), jnp.float32),
        ],
        compiler_params=pltpu.CompilerParams(
            dimension_semantics=("parallel",)),
        cost_estimate=pl.CostEstimate(
            flops=2 * n_tiles * K * T_H * (Wp * Cin) * lane_out,
            transcendentals=0,
            bytes_accessed=(x_bands.size * itemsize + w_toep.size * itemsize
                            + n_tiles * (T_H + 2) * lane_out * 4)),
    )
    y, part = pass1(x_bands, w_toep)

    # ---- global BN statistics: tiny cross-tile + per-wo reduction -------------
    Mtot = N * Ho * Wo
    if bn:
        st = part.reshape(n_tiles, 2, Wo, Cout).sum(axis=(0, 2))      # [2, Cout]
        mean = st[0] / Mtot
        var = st[1] / Mtot - mean * mean          # biased var (BN training mode)
        scale_c = gamma.astype(jnp.float32) * jax.lax.rsqrt(var + BN_EPS)
        # conv bias cancels exactly under the BN mean subtraction -> folded away
        shift_c = beta.astype(jnp.float32) - mean * scale_c
    else:
        scale_c = jnp.ones((Cout,), jnp.float32)
        shift_c = bias.astype(jnp.float32)
    scale_l = jnp.tile(scale_c, Wo).reshape(1, lane_out)
    shift_l = jnp.tile(shift_c, Wo).reshape(1, lane_out)

    # ---- pass 2: normalize (or bias) + activation, lane-dense stores ----------
    pass2 = pl.pallas_call(
        functools.partial(_scale_shift_act_kernel, relu=relu),
        grid=(n_tiles,),
        in_specs=[
            pl.BlockSpec((1, T_H, lane_out), lambda i: (i, 0, 0)),
            pl.BlockSpec((1, lane_out), lambda i: (0, 0)),
            pl.BlockSpec((1, lane_out), lambda i: (0, 0)),
        ],
        out_specs=pl.BlockSpec((1, T_H, lane_out), lambda i: (i, 0, 0)),
        out_shape=jax.ShapeDtypeStruct((n_tiles, T_H, lane_out), jnp.float32),
        compiler_params=pltpu.CompilerParams(
            dimension_semantics=("parallel",)),
        cost_estimate=pl.CostEstimate(
            flops=3 * n_tiles * T_H * lane_out,
            transcendentals=0,
            bytes_accessed=2 * n_tiles * T_H * lane_out * 4),
    )
    out = pass2(y, scale_l, shift_l)

    out = out.reshape(N, Ho, Wo, Cout)
    return jnp.transpose(out, (0, 3, 1, 2)).astype(x_nchw.dtype)   # back to NCHW


def reference_forward(x, weight, bias, gamma, beta, *, stride, padding, bn, relu):
    """Pure-JAX reference (mirrors PyTorch semantics) for correctness check."""
    y = jax.lax.conv_general_dilated(
        x, weight, (stride, stride), [(padding, padding)] * 2,
        dimension_numbers=("NCHW", "OIHW", "NCHW"))
    y = y + bias[None, :, None, None]
    if bn:
        mean = jnp.mean(y, axis=(0, 2, 3), keepdims=True)
        var = jnp.mean(jnp.square(y - mean), axis=(0, 2, 3), keepdims=True)
        y = ((y - mean) * jax.lax.rsqrt(var + BN_EPS)
             * gamma[None, :, None, None] + beta[None, :, None, None])
    if relu:
        y = jnp.maximum(y, 0.0)
    return y


if __name__ == "__main__":
    # Shapes consistent with Conv(in_dim=4, out_dim=8, kernel_size=3, stride=1,
    # padding=1, bn=True, activation=nn.ReLU())
    N, Cin, H, W = 2, 4, 16, 16
    Cout, K, stride, padding = 8, 3, 1, 1

    key = jax.random.PRNGKey(0)
    kx, kw, kb = jax.random.split(key, 3)
    x = jax.random.normal(kx, (N, Cin, H, W), dtype=jnp.float32)
    weight = jax.random.normal(kw, (Cout, Cin, K, K), dtype=jnp.float32) * 0.1
    bias = jax.random.normal(kb, (Cout,), dtype=jnp.float32) * 0.1
    gamma = jnp.ones((Cout,), dtype=jnp.float32)   # BatchNorm2d weight init
    beta = jnp.zeros((Cout,), dtype=jnp.float32)   # BatchNorm2d bias init

    out = conv_forward(x, weight, bias, gamma, beta,
                       stride=stride, padding=padding, bn=True, relu=True)
    out = jax.block_until_ready(out)

    ref = reference_forward(x, weight, bias, gamma, beta,
                            stride=stride, padding=padding, bn=True, relu=True)
    ref = jax.block_until_ready(ref)

    assert out.shape == (N, Cout, H, W), out.shape
    assert jnp.allclose(out, ref, atol=1e-4, rtol=1e-4), \
        f"max abs err = {jnp.max(jnp.abs(out - ref))}"
    print("KERNEL_OK")
</pallas_src>

<mosaic_0001>
module attributes {stable_mosaic.version = 11 : i64} {
  func.func @_conv_pass1_kernel(%arg0: i32, %arg1: memref<1x18x72xf32, #tpu.memory_space<vmem>>, %arg2: memref<3x72x128xf32, #tpu.memory_space<vmem>>, %arg3: memref<1x16x128xf32, #tpu.memory_space<vmem>>, %arg4: memref<1x2x128xf32, #tpu.memory_space<vmem>>) attributes {dimension_semantics = [#tpu.dimension_semantics<parallel>], iteration_bounds = array<i64: 2>, scalar_prefetch = 0 : i64, scratch_operands = 0 : i64, tpu.core_type = #tpu.core_type<tc>, window_params = [{transform_indices = @transform_0, window_bounds = array<i64: 1, 18, 72>}, {pipeline_mode = #tpu.pipeline_mode<synchronous>, transform_indices = @transform_1, window_bounds = array<i64: 3, 72, 128>}, {transform_indices = @transform_2, window_bounds = array<i64: 1, 16, 128>}, {transform_indices = @transform_3, window_bounds = array<i64: 1, 2, 128>}]} {
    %c0 = arith.constant 0 : index
    %c0_0 = arith.constant 0 : index
    %c0_1 = arith.constant 0 : index
    %0 = vector.load %arg1[%c0, %c0_0, %c0_1] : memref<1x18x72xf32, #tpu.memory_space<vmem>>, vector<1x18x72xf32>
    %1 = vector.shape_cast %0 : vector<1x18x72xf32> to vector<18x72xf32>
    %2 = vector.extract_strided_slice %1 {offsets = [0, 0], sizes = [16, 72], strides = [1, 1]} : vector<18x72xf32> to vector<16x72xf32>
    %c0_2 = arith.constant 0 : index
    %c0_3 = arith.constant 0 : index
    %c0_4 = arith.constant 0 : index
    %3 = vector.load %arg2[%c0_2, %c0_3, %c0_4] : memref<3x72x128xf32, #tpu.memory_space<vmem>>, vector<1x72x128xf32>
    %4 = vector.shape_cast %3 : vector<1x72x128xf32> to vector<72x128xf32>
    %cst = arith.constant dense<0.000000e+00> : vector<16x128xf32>
    %5 = tpu.matmul %2, %4, %cst {dimension_numbers = #tpu.dot_dimension_numbers<[1], [0], [0], [1], [0, 0, 1, 1], [], []>} : vector<16x72xf32>, vector<72x128xf32>, vector<16x128xf32> -> vector<16x128xf32>
    %6 = vector.extract_strided_slice %1 {offsets = [1, 0], sizes = [16, 72], strides = [1, 1]} : vector<18x72xf32> to vector<16x72xf32>
    %c1 = arith.constant 1 : index
    %c0_5 = arith.constant 0 : index
    %c0_6 = arith.constant 0 : index
    %7 = vector.load %arg2[%c1, %c0_5, %c0_6] : memref<3x72x128xf32, #tpu.memory_space<vmem>>, vector<1x72x128xf32>
    %8 = vector.shape_cast %7 : vector<1x72x128xf32> to vector<72x128xf32>
    %cst_7 = arith.constant dense<0.000000e+00> : vector<16x128xf32>
    %9 = tpu.matmul %6, %8, %cst_7 {dimension_numbers = #tpu.dot_dimension_numbers<[1], [0], [0], [1], [0, 0, 1, 1], [], []>} : vector<16x72xf32>, vector<72x128xf32>, vector<16x128xf32> -> vector<16x128xf32>
    %10 = arith.addf %5, %9 : vector<16x128xf32>
    %11 = vector.extract_strided_slice %1 {offsets = [2, 0], sizes = [16, 72], strides = [1, 1]} : vector<18x72xf32> to vector<16x72xf32>
    %c2 = arith.constant 2 : index
    %c0_8 = arith.constant 0 : index
    %c0_9 = arith.constant 0 : index
    %12 = vector.load %arg2[%c2, %c0_8, %c0_9] : memref<3x72x128xf32, #tpu.memory_space<vmem>>, vector<1x72x128xf32>
    %13 = vector.shape_cast %12 : vector<1x72x128xf32> to vector<72x128xf32>
    %cst_10 = arith.constant dense<0.000000e+00> : vector<16x128xf32>
    %14 = tpu.matmul %11, %13, %cst_10 {dimension_numbers = #tpu.dot_dimension_numbers<[1], [0], [0], [1], [0, 0, 1, 1], [], []>} : vector<16x72xf32>, vector<72x128xf32>, vector<16x128xf32> -> vector<16x128xf32>
    %15 = arith.addf %10, %14 : vector<16x128xf32>
    %c0_11 = arith.constant 0 : index
    %c0_12 = arith.constant 0 : index
    %c0_13 = arith.constant 0 : index
    %16 = vector.load %arg3[%c0_11, %c0_12, %c0_13] : memref<1x16x128xf32, #tpu.memory_space<vmem>>, vector<1x16x128xf32>
    %17 = vector.shape_cast %16 : vector<1x16x128xf32> to vector<16x128xf32>
    %18 = vector.shape_cast %15 : vector<16x128xf32> to vector<1x16x128xf32>
    tpu.vector_store %arg3[%c0_11, %c0_12, %c0_13], %18 {strides = array<i32>} : memref<1x16x128xf32, #tpu.memory_space<vmem>>, vector<1x16x128xf32>,
    %cst_14 = arith.constant dense<0.000000e+00> : vector<128xf32>
    %19 = vector.multi_reduction <add>, %15, %cst_14 [0] : vector<16x128xf32> to vector<128xf32>
    %20 = vector.shape_cast %19 : vector<128xf32> to vector<1x128xf32>
    %21 = arith.mulf %15, %15 : vector<16x128xf32>
    %cst_15 = arith.constant dense<0.000000e+00> : vector<128xf32>
    %22 = vector.multi_reduction <add>, %21, %cst_15 [0] : vector<16x128xf32> to vector<128xf32>
    %23 = vector.shape_cast %22 : vector<128xf32> to vector<1x128xf32>
    %24 = tpu.concatenate %20, %23 in 0 : vector<1x128xf32>, vector<1x128xf32> -> vector<2x128xf32>
    %c0_16 = arith.constant 0 : index
    %c0_17 = arith.constant 0 : index
    %c0_18 = arith.constant 0 : index
    %25 = vector.load %arg4[%c0_16, %c0_17, %c0_18] : memref<1x2x128xf32, #tpu.memory_space<vmem>>, vector<1x2x128xf32>
    %26 = vector.shape_cast %25 : vector<1x2x128xf32> to vector<2x128xf32>
    %27 = vector.shape_cast %24 : vector<2x128xf32> to vector<1x2x128xf32>
    tpu.vector_store %arg4[%c0_16, %c0_17, %c0_18], %27 {strides = array<i32>} : memref<1x2x128xf32, #tpu.memory_space<vmem>>, vector<1x2x128xf32>,
    return
  }
  func.func @transform_0(%arg0: i32) -> (i32, i32, i32) {
    %c0_i32 = arith.constant 0 : i32
    %c0_i32_0 = arith.constant 0 : i32
    %c0_i32_1 = arith.constant 0 : i32
    return %arg0, %c0_i32, %c0_i32_0 : i32, i32, i32
  }
  func.func @transform_1(%arg0: i32) -> (i32, i32, i32) {
    %c0_i32 = arith.constant 0 : i32
    %c0_i32_0 = arith.constant 0 : i32
    %c0_i32_1 = arith.constant 0 : i32
    %c0_i32_2 = arith.constant 0 : i32
    return %c0_i32, %c0_i32_0, %c0_i32_1 : i32, i32, i32
  }
  func.func @transform_2(%arg0: i32) -> (i32, i32, i32) {
    %c0_i32 = arith.constant 0 : i32
    %c0_i32_0 = arith.constant 0 : i32
    %c0_i32_1 = arith.constant 0 : i32
    return %arg0, %c0_i32, %c0_i32_0 : i32, i32, i32
  }
  func.func @transform_3(%arg0: i32) -> (i32, i32, i32) {
    %c0_i32 = arith.constant 0 : i32
    %c0_i32_0 = arith.constant 0 : i32
    %c0_i32_1 = arith.constant 0 : i32
    return %arg0, %c0_i32, %c0_i32_0 : i32, i32, i32
  }
}

</mosaic_0001>

<llo_original>
// kernel: tpu_custom_call.1
$region0: #{tpu_custom_call.1}
  #allocation0 [shape = 'u32[]', space=smem, size = 0x4, offset = 0x4, fixed_abs, tag = 'smem constant byte address 0x4 - core index']
  #allocation1 [shape = 'u32[144,128]{1,0:T(1,128)}', space=vmem, size = 0x12000, scoped, tag = 'internal scratch']
  %s0 = inlined_call_operand.vmem [shape: f32[2,18,72], index: 0, kind: input, shape index: {}]
  %s1 = inlined_call_operand.hbm [shape: f32[3,72,128], index: 1, kind: input, shape index: {}]
  %s2 = inlined_call_operand.hbm [shape: f32[2,16,128], index: 2, kind: output, shape index: {0}]
  %s3 = inlined_call_operand.hbm [shape: f32[2,2,128], index: 3, kind: output, shape index: {1}]
  %4 = xla_tuple %s2, %s3
  %s5 = sld [smem:[#allocation0]]
  $region53: #{tpu_custom_call.1} parent=0
    _
  %s7 = ssub.s32 1, %s5
  %s8 = scalar_select 0, %s7, %s5
  $region1: #{tpu_custom_call.1} parent=0
    #allocation2 [shape = 'u8[110592]{0}', space=vmem, size = 0x1b000, scoped, tag = 'input window, operand 1, single buffered']
    #allocation3 [shape = 's32[2]{0}', space=sflag, size = 0x8, scoped, tag = 'scoped memory for tpu_custom_call.1']
    #allocation4 [shape = 's32[2]{0}', space=sflag, size = 0x8, scoped, tag = 'scoped memory for tpu_custom_call.1']
    #allocation5 [shape = 'u8[16384]{0}', space=vmem, size = 0x4000, scoped, tag = 'output window, operand 0']
    #allocation6 [shape = 'u8[2048]{0}', space=vmem, size = 0x800, scoped, tag = 'output window, operand 1']
    #allocation7 [shape = 's32[2]{0}', space=sflag, size = 0x8, scoped, tag = 'scoped memory for tpu_custom_call.1']
    %9 = vsyncpa [#allocation3], 0
    %10 = vsyncpa [#allocation4], 0
    %s11 = scalar_lea.sflag [#allocation4], 1
    %12 = vsyncpa %s11, 0
    %13 = vsyncpa [#allocation7], 0
    %s14 = scalar_lea.sflag [#allocation7], 1
    %15 = vsyncpa %s14, 0
    loop: start=0, step=1, limit=4
    $region2: #{tpu_custom_call.1} parent=1 // loop_pre_header
      _
    $region3: #{tpu_custom_call.1} parent=1 // loop_header
      %s17 = sphi 0, %s21
      %p18 = scmp.ge.s32.totalorder %s17, 4
      %s27 = sphi 0, %s29
      %s30 = sphi 0, %s27
      %s31 = sphi 0, %s30
      %s47 = sphi 0, %s31
      %s51 = sphi 0, %s51
      %s53 = sphi 0, %s51
      %s54 = sphi 0, %s53
      %s68 = sphi 0, %s54
      %s74 = sphi 0, %s76
      %s77 = sphi 0, %s74
      %s78 = sphi 0, %s77
      %s94 = sphi 0, %s78
      %s100 = sphi 0, %s102
      %s103 = sphi 0, %s100
      %s104 = sphi 0, %s103
      %s120 = sphi 0, %s104
    $region4: #{tpu_custom_call.1} parent=1 // loop_header_branch
      %20 = sbr.rel (%p18) target = $region8
    $region5: #{tpu_custom_call.1} parent=1 // loop_body
      %s22 = ssub.s32 %s17, 1
      %s23 = ssub.s32 %s17, 2
      %s24 = sadd.s32 %s17, 1
      %s25 = ssub.s32 %s17, %s24
      %p26 = scmp.eq.s32.totalorder %s25, 0
      %s28 = sadd.s32 %s27, 1
      %s29 = scalar_select %p26, %s27, %s28
      %p32 = pneg %p26
      %p33 = scmp.eq.s32.totalorder %s17, 1
      %p34 = por %p32, %p33
      %p35 = scmp.ne.s32.totalorder %s27, %s30
      %p36 = scmp.eq.s32.totalorder %s17, 0
      %p37 = por %p35, %p36
      %p38 = scmp.ne.s32.totalorder %s27, %s30
      %p39 = scmp.eq.s32.totalorder %s22, 1
      %p40 = por %p38, %p39
      %p41 = scmp.ne.s32.totalorder %s30, %s31
      %p42 = scmp.eq.s32.totalorder %s22, 0
      %p43 = por %p41, %p42
      %p44 = scmp.ne.s32.totalorder %s30, %s31
      %p45 = scmp.eq.s32.totalorder %s23, 1
      %p46 = por %p44, %p45
      %p48 = scmp.ne.s32.totalorder %s31, %s47
      %p49 = scmp.eq.s32.totalorder %s23, 0
      %p50 = por %p48, %p49
      %s52 = sadd.s32 %s51, 1
      %p55 = scmp.eq.s32.totalorder %s17, 1
      %p56 = scmp.ne.s32.totalorder %s51, %s53
      %p57 = scmp.eq.s32.totalorder %s17, 0
      %p58 = por %p56, %p57
      %p59 = scmp.ne.s32.totalorder %s51, %s53
      %p60 = scmp.eq.s32.totalorder %s22, 1
      %p61 = por %p59, %p60
      %p62 = scmp.ne.s32.totalorder %s53, %s54
      %p63 = scmp.eq.s32.totalorder %s22, 0
      %p64 = por %p62, %p63
      %p65 = scmp.ne.s32.totalorder %s53, %s54
      %p66 = scmp.eq.s32.totalorder %s23, 1
      %p67 = por %p65, %p66
      %p69 = scmp.ne.s32.totalorder %s54, %s68
      %p70 = scmp.eq.s32.totalorder %s23, 0
      %p71 = por %p69, %p70
      %s72 = ssub.s32 %s17, %s24
      %p73 = scmp.eq.s32.totalorder %s72, 0
      %s75 = sadd.s32 %s74, 1
      %s76 = scalar_select %p73, %s74, %s75
      %p79 = pneg %p73
      %p80 = scmp.eq.s32.totalorder %s17, 1
      %p81 = por %p79, %p80
      %p82 = scmp.ne.s32.totalorder %s74, %s77
      %p83 = scmp.eq.s32.totalorder %s17, 0
      %p84 = por %p82, %p83
      %p85 = scmp.ne.s32.totalorder %s74, %s77
      %p86 = scmp.eq.s32.totalorder %s22, 1
      %p87 = por %p85, %p86
      %p88 = scmp.ne.s32.totalorder %s77, %s78
      %p89 = scmp.eq.s32.totalorder %s22, 0
      %p90 = por %p88, %p89
      %p91 = scmp.ne.s32.totalorder %s77, %s78
      %p92 = scmp.eq.s32.totalorder %s23, 1
      %p93 = por %p91, %p92
      %p95 = scmp.ne.s32.totalorder %s78, %s94
      %p96 = scmp.eq.s32.totalorder %s23, 0
      %p97 = por %p95, %p96
      %s98 = ssub.s32 %s17, %s24
      %p99 = scmp.eq.s32.totalorder %s98, 0
      %s101 = sadd.s32 %s100, 1
      %s102 = scalar_select %p99, %s100, %s101
      %p105 = pneg %p99
      %p106 = scmp.eq.s32.totalorder %s17, 1
      %p107 = por %p105, %p106
      %p108 = scmp.ne.s32.totalorder %s100, %s103
      %p109 = scmp.eq.s32.totalorder %s17, 0
      %p110 = por %p108, %p109
      %p111 = scmp.ne.s32.totalorder %s100, %s103
      %p112 = scmp.eq.s32.totalorder %s22, 1
      %p113 = por %p111, %p112
      %p114 = scmp.ne.s32.totalorder %s103, %s104
      %p115 = scmp.eq.s32.totalorder %s22, 0
      %p116 = por %p114, %p115
      %p117 = scmp.ne.s32.totalorder %s103, %s104
      %p118 = scmp.eq.s32.totalorder %s23, 1
      %p119 = por %p117, %p118
      %p121 = scmp.ne.s32.totalorder %s104, %s120
      %p122 = scmp.eq.s32.totalorder %s23, 0
      %p123 = por %p121, %p122
      %p124 = scmp.le.s32.totalorder 1, %s17
      %p125 = scmp.lt.s32.totalorder %s17, 3
      %p126 = pnand %p124, %p125
      %p127 = pneg %p126
      // Predicated region
      $region9: #{tpu_custom_call.1} parent=5 // pred_check
        _
      $region10: #{tpu_custom_call.1} parent=5 // pred_check_branch
        %129 = sbr.rel (%p126) target = $region12
      $region11: #{tpu_custom_call.1} parent=5 // pred_region
        %s130 = ssub.s32 %s17, 1
        // Predicated region
        $region13: #{tpu_custom_call.1} parent=11 // pred_check
          %p131 = pneg %p64
        $region14: #{tpu_custom_call.1} parent=11 // pred_check_branch
          %133 = sbr.rel (%p131) target = $region16
        $region15: #{tpu_custom_call.1} parent=11 // pred_region
          %s135 = ssub.s32 3456, 3456
          %136 = vsyncadd [#allocation3], %s135
          %s137 = sshll.u32 [#allocation2], 4
          %s138 = int_to_ptr.vmem [resolvable:$true] %s137
          %143 = dma.hbm_to_vmem [thread:$0]  %s1, 3456, %s138, [#allocation3], 128, 128, 8
        $region16: #{tpu_custom_call.1} parent=11 // pred_fallthru
          _
      $region12: #{tpu_custom_call.1} parent=5 // pred_fallthru
        _
      %p144 = scmp.lt.s32.totalorder %s17, 2
      // Predicated region
      $region17: #{tpu_custom_call.1} parent=5 // pred_check
        %p145 = pneg %p144
      $region18: #{tpu_custom_call.1} parent=5 // pred_check_branch
        %147 = sbr.rel (%p145) target = $region20
      $region19: #{tpu_custom_call.1} parent=5 // pred_region
        // Predicated region
        $region21: #{tpu_custom_call.1} parent=19 // pred_check
          %p148 = pneg %p37
        $region22: #{tpu_custom_call.1} parent=19 // pred_check_branch
          %150 = sbr.rel (%p148) target = $region24
        $region23: #{tpu_custom_call.1} parent=19 // pred_region
          %p151 = scmp.lt.s32.totalorder %s17, 1
          %s152 = scalar_select %p151, %s17, 1
          %s153 = smul.addr %s152, 3
          %s154 = smul.addr %s153, 8
          %s155 = scalar_lea.vmem %s0, %s154
        $region24: #{tpu_custom_call.1} parent=19 // pred_fallthru
          _
      $region20: #{tpu_custom_call.1} parent=5 // pred_fallthru
        _
      %p156 = scmp.le.s32.totalorder 1, %s17
      %p157 = scmp.lt.s32.totalorder %s17, 3
      %p158 = pnand %p156, %p157
      %p159 = pneg %p158
      // Predicated region
      $region25: #{tpu_custom_call.1} parent=5 // pred_check
        _
      $region26: #{tpu_custom_call.1} parent=5 // pred_check_branch
        %161 = sbr.rel (%p158) target = $region28
      $region27: #{tpu_custom_call.1} parent=5 // pred_region
        %s162 = ssub.s32 %s17, 1
        // Predicated region
        $region29: #{tpu_custom_call.1} parent=27 // pred_check
          %p163 = pneg %p64
        $region30: #{tpu_custom_call.1} parent=27 // pred_check_branch
          %165 = sbr.rel (%p163) target = $region32
        $region31: #{tpu_custom_call.1} parent=27 // pred_region
          %166 = dma.done [#allocation3], 3456
        $region32: #{tpu_custom_call.1} parent=27 // pred_fallthru
          _
        %p167 = scmp.lt.s32.totalorder %s22, 1
        %s168 = scalar_select %p167, %s22, 1
        %s169 = smul.addr %s168, 3
        %s170 = smul.addr %s169, 8
        %s171 = scalar_lea.vmem %s0, %s170
        %p172 = pneg %p43
        %p173 = pneg %p40
        %p174 = pneg %p64
        %p175 = pneg %p61
        %p176 = pneg %p90
        %p177 = pneg %p87
        %s178 = sand.u32 %s77, 1
        %s179 = scalar_lea.sflag [#allocation4], %s178
        %s180 = sand.u32 %s77, 1
        %s181 = smul.addr %s180, 16
        %s182 = scalar_lea.vmem [#allocation5], %s181
        %p183 = pneg %p116
        %p184 = pneg %p113
        %s185 = sand.u32 %s103, 1
        %s186 = scalar_lea.sflag [#allocation7], %s185
        %s187 = sand.u32 %s103, 1
        %s188 = smul.addr %s187, 2
        %s189 = scalar_lea.vmem [#allocation6], %s188
        %p190 = scmp.lt.s32.totalorder %s22, 1
        %s191 = scalar_select %p190, %s22, 1
        %s192 = smul.addr %s191, 3
        %s193 = smul.addr %s192, 8
        %s194 = scalar_lea.vmem %s0, %s193
        %v195 = vld [vmem:[%s194] sm:$0xff]
        %v196 = vld [vmem:[%s194 + $0x8] sm:$0xff]
        %v197 = vld [vmem:[%s194 + $0x10] sm:$0x3]
        %v198 = vld [vmem:[#allocation2] sm:$0xff]
        %v199 = vld [vmem:[#allocation2 + $0x8] sm:$0xff]
        %v200 = vld [vmem:[#allocation2 + $0x10] sm:$0xff]
        %v201 = vld [vmem:[#allocation2 + $0x18] sm:$0xff]
        %v202 = vld [vmem:[#allocation2 + $0x20] sm:$0xff]
        %v203 = vld [vmem:[#allocation2 + $0x28] sm:$0xff]
        %v204 = vld [vmem:[#allocation2 + $0x30] sm:$0xff]
        %v205 = vld [vmem:[#allocation2 + $0x38] sm:$0xff]
        %v206 = vld [vmem:[#allocation2 + $0x40] sm:$0xff]
        %s207 = scalar_lea.vmem [#allocation2], 72
        %v208 = vld [vmem:[%s207] sm:$0xff]
        %v209 = vld [vmem:[%s207 + $0x8] sm:$0xff]
        %v210 = vld [vmem:[%s207 + $0x10] sm:$0xff]
        %v211 = vld [vmem:[%s207 + $0x18] sm:$0xff]
        %v212 = vld [vmem:[%s207 + $0x20] sm:$0xff]
        %v213 = vld [vmem:[%s207 + $0x28] sm:$0xff]
        %v214 = vld [vmem:[%s207 + $0x30] sm:$0xff]
        %v215 = vld [vmem:[%s207 + $0x38] sm:$0xff]
        %v216 = vld [vmem:[%s207 + $0x40] sm:$0xff]
        %vm220 = vcmask 1046528
        %v221 = vrot.slane %v195, 1
        %v222 = vrot.slane %v196, 1
        %v223 = vsel %vm220, %v221, %v222
        %v224 = vrot.slane %v197, 1
        %v225 = vsel %vm220, %v222, %v224
        %vm226 = vcmask 588800
        %v227 = vsel %vm226, %v223, 0
        %v229 = vsel %vm226, %v225, 0
        %231 = vmatprep.subr.mxu0 0.0
        %232 = vmatpush1.msra.mxu0 %v208
        %233 = vmatprep.subr.mxu0 0.0
        %234 = vmatpush1.msra.mxu0 %v209
        %235 = vmatprep.subr.mxu0 0.0
        %236 = vmatpush1.msra.mxu0 %v210
        %237 = vmatprep.subr.mxu0 0.0
        %238 = vmatpush1.msra.mxu0 %v211
        %239 = vmatprep.subr.mxu0 0.0
        %240 = vmatpush1.msra.mxu0 %v212
        %241 = vmatprep.subr.mxu0 0.0
        %242 = vmatpush1.msra.mxu0 %v213
        %243 = vmatprep.subr.mxu0 0.0
        %244 = vmatpush1.msra.mxu0 %v214
        %245 = vmatprep.subr.mxu0 0.0
        %246 = vmatpush1.msra.mxu0 %v215
        %247 = vmatprep.subr.mxu0 0.0
        %248 = vmatpush1.msra.mxu0 %v216
        %249 = vmatprep.subr.mxu0 0.0
        %250 = vmatpush1.msra.mxu0 0.0
        %251 = vmatprep.subr.mxu0 0.0
        %252 = vmatpush1.msra.mxu0 0.0
        %253 = vmatprep.subr.mxu0 0.0
        %254 = vmatpush1.msra.mxu0 0.0
        %255 = vmatprep.subr.mxu0 0.0
        %256 = vmatpush1.msra.mxu0 0.0
        %257 = vmatprep.subr.mxu0 0.0
        %258 = vmatpush1.msra.mxu0 0.0
        %259 = vmatprep.subr.mxu0 0.0
        %260 = vmatpush1.msra.mxu0 0.0
        %261 = vmatprep.subr.mxu0 0.0
        %262 = vmatpush1.msra.mxu0 0.0
        %263 = vmatprep.subr.mxu0 0.0
        %264 = vmatpush1.msra.mxu0 0.0
        %265 = vmatprep.subr.mxu0 0.0
        %266 = vmatpush1.msra.mxu0 0.0
        %267 = vmatprep.subr.mxu0 0.0
        %268 = vmatpush1.msra.mxu0 0.0
        %269 = vmatprep.subr.mxu0 0.0
        %270 = vmatpush1.msra.mxu0 0.0
        %271 = vmatprep.subr.mxu0 0.0
        %272 = vmatpush1.msra.mxu0 0.0
        %273 = vmatprep.subr.mxu0 0.0
        %274 = vmatpush1.msra.mxu0 0.0
        %275 = vmatprep.subr.mxu0 0.0
        %276 = vmatpush1.msra.mxu0 0.0
        %277 = vmatprep.subr.mxu0 0.0
        %278 = vmatpush1.msra.mxu0 0.0
        %279 = vmatprep.subr.mxu0 0.0
        %280 = vmatpush1.msra.mxu0 0.0
        %281 = vmatprep.subr.mxu0 0.0
        %282 = vmatpush1.msra.mxu0 0.0
        %283 = vmatprep.subr.mxu0 0.0
        %284 = vmatpush1.msra.mxu0 0.0
        %285 = vmatprep.subr.mxu0 0.0
        %286 = vmatpush1.msra.mxu0 0.0
        %287 = vmatprep.subr.mxu0 0.0
        %288 = vmatpush1.msra.mxu0 0.0
        %289 = vmatprep.subr.mxu0 0.0
        %290 = vmatpush1.msra.mxu0 0.0
        %291 = vmatprep.subr.mxu0 0.0
        %292 = vmatpush1.msra.mxu0 0.0
        %293 = vmatprep.subr.mxu0 0.0
        %294 = vmatpush1.msra.mxu0 0.0
        %295 = vmatprep.mubr.f32.mxu0 0.0
        %296 = vmatmul.mubr.f32.gmra.mrb[0].mxu0 %v227
        %v297 = vpop.f32.mrb[0].mxu0
        %v298 = vadd.f32 0.0, %v297
        %v299 = vpop.f32.mrb[0].mxu0
        %300 = vmatprep.mubr.f32.mxu0 0.0
        %301 = vmatmul.mubr.f32.gmra.mrb[0].mxu0 %v229
        %v302 = vpop.f32.mrb[0].mxu0
        %v303 = vadd.f32 0.0, %v302
        %v304 = vpop.f32.mrb[0].mxu0
        %305 = vdwg.mxu0
        %v306 = vsel %vm226, %v195, 0
        %v308 = vsel %vm226, %v196, 0
        %310 = vmatprep.subr.mxu0 0.0
        %311 = vmatpush1.msra.mxu0 %v198
        %312 = vmatprep.subr.mxu0 0.0
        %313 = vmatpush1.msra.mxu0 %v199
        %314 = vmatprep.subr.mxu0 0.0
        %315 = vmatpush1.msra.mxu0 %v200
        %316 = vmatprep.subr.mxu0 0.0
        %317 = vmatpush1.msra.mxu0 %v201
        %318 = vmatprep.subr.mxu0 0.0
        %319 = vmatpush1.msra.mxu0 %v202
        %320 = vmatprep.subr.mxu0 0.0
        %321 = vmatpush1.msra.mxu0 %v203
        %322 = vmatprep.subr.mxu0 0.0
        %323 = vmatpush1.msra.mxu0 %v204
        %324 = vmatprep.subr.mxu0 0.0
        %325 = vmatpush1.msra.mxu0 %v205
        %326 = vmatprep.subr.mxu0 0.0
        %327 = vmatpush1.msra.mxu0 %v206
        %328 = vmatprep.subr.mxu0 0.0
        %329 = vmatpush1.msra.mxu0 0.0
        %330 = vmatprep.subr.mxu0 0.0
        %331 = vmatpush1.msra.mxu0 0.0
        %332 = vmatprep.subr.mxu0 0.0
        %333 = vmatpush1.msra.mxu0 0.0
        %334 = vmatprep.subr.mxu0 0.0
        %335 = vmatpush1.msra.mxu0 0.0
        %336 = vmatprep.subr.mxu0 0.0
        %337 = vmatpush1.msra.mxu0 0.0
        %338 = vmatprep.subr.mxu0 0.0
        %339 = vmatpush1.msra.mxu0 0.0
        %340 = vmatprep.subr.mxu0 0.0
        %341 = vmatpush1.msra.mxu0 0.0
        %342 = vmatprep.subr.mxu0 0.0
        %343 = vmatpush1.msra.mxu0 0.0
        %344 = vmatprep.subr.mxu0 0.0
        %345 = vmatpush1.msra.mxu0 0.0
        %346 = vmatprep.subr.mxu0 0.0
        %347 = vmatpush1.msra.mxu0 0.0
        %348 = vmatprep.subr.mxu0 0.0
        %349 = vmatpush1.msra.mxu0 0.0
        %350 = vmatprep.subr.mxu0 0.0
        %351 = vmatpush1.msra.mxu0 0.0
        %352 = vmatprep.subr.mxu0 0.0
        %353 = vmatpush1.msra.mxu0 0.0
        %354 = vmatprep.subr.mxu0 0.0
        %355 = vmatpush1.msra.mxu0 0.0
        %356 = vmatprep.subr.mxu0 0.0
        %357 = vmatpush1.msra.mxu0 0.0
        %358 = vmatprep.subr.mxu0 0.0
        %359 = vmatpush1.msra.mxu0 0.0
        %360 = vmatprep.subr.mxu0 0.0
        %361 = vmatpush1.msra.mxu0 0.0
        %362 = vmatprep.subr.mxu0 0.0
        %363 = vmatpush1.msra.mxu0 0.0
        %364 = vmatprep.subr.mxu0 0.0
        %365 = vmatpush1.msra.mxu0 0.0
        %366 = vmatprep.subr.mxu0 0.0
        %367 = vmatpush1.msra.mxu0 0.0
        %368 = vmatprep.subr.mxu0 0.0
        %369 = vmatpush1.msra.mxu0 0.0
        %370 = vmatprep.subr.mxu0 0.0
        %371 = vmatpush1.msra.mxu0 0.0
        %372 = vmatprep.subr.mxu0 0.0
        %373 = vmatpush1.msra.mxu0 0.0
        %374 = vmatprep.mubr.f32.mxu0 0.0
        %375 = vmatmul.mubr.f32.gmra.mrb[0].mxu0 %v306
        %v376 = vpop.f32.mrb[0].mxu0
        %v377 = vadd.f32 %v298, %v376
        %v378 = vpop.f32.mrb[0].mxu0
        %379 = vmatprep.mubr.f32.mxu0 0.0
        %380 = vmatmul.mubr.f32.gmra.mrb[0].mxu0 %v308
        %v381 = vpop.f32.mrb[0].mxu0
        %v382 = vadd.f32 %v303, %v381
        %v383 = vpop.f32.mrb[0].mxu0
        %384 = vdwg.mxu0
        %s385 = scalar_lea.vmem [#allocation2], 144
        %v386 = vld [vmem:[%s385] sm:$0xff]
        %v387 = vld [vmem:[%s385 + $0x8] sm:$0xff]
        %v388 = vld [vmem:[%s385 + $0x10] sm:$0xff]
        %v389 = vld [vmem:[%s385 + $0x18] sm:$0xff]
        %v390 = vld [vmem:[%s385 + $0x20] sm:$0xff]
        %v391 = vld [vmem:[%s385 + $0x28] sm:$0xff]
        %v392 = vld [vmem:[%s385 + $0x30] sm:$0xff]
        %v393 = vld [vmem:[%s385 + $0x38] sm:$0xff]
        %v394 = vld [vmem:[%s385 + $0x40] sm:$0xff]
        %vm395 = vcmask 1045504
        %v396 = vrot.slane %v195, 2
        %v397 = vrot.slane %v196, 2
        %v398 = vsel %vm395, %v396, %v397
        %v399 = vrot.slane %v197, 2
        %v400 = vsel %vm395, %v397, %v399
        %v401 = vsel %vm226, %v398, 0
        %v403 = vsel %vm226, %v400, 0
        %405 = vmatprep.subr.mxu0 0.0
        %406 = vmatpush1.msra.mxu0 %v386
        %407 = vmatprep.subr.mxu0 0.0
        %408 = vmatpush1.msra.mxu0 %v387
        %409 = vmatprep.subr.mxu0 0.0
        %410 = vmatpush1.msra.mxu0 %v388
        %411 = vmatprep.subr.mxu0 0.0
        %412 = vmatpush1.msra.mxu0 %v389
        %413 = vmatprep.subr.mxu0 0.0
        %414 = vmatpush1.msra.mxu0 %v390
        %415 = vmatprep.subr.mxu0 0.0
        %416 = vmatpush1.msra.mxu0 %v391
        %417 = vmatprep.subr.mxu0 0.0
        %418 = vmatpush1.msra.mxu0 %v392
        %419 = vmatprep.subr.mxu0 0.0
        %420 = vmatpush1.msra.mxu0 %v393
        %421 = vmatprep.subr.mxu0 0.0
        %422 = vmatpush1.msra.mxu0 %v394
        %423 = vmatprep.subr.mxu0 0.0
        %424 = vmatpush1.msra.mxu0 0.0
        %425 = vmatprep.subr.mxu0 0.0
        %426 = vmatpush1.msra.mxu0 0.0
        %427 = vmatprep.subr.mxu0 0.0
        %428 = vmatpush1.msra.mxu0 0.0
        %429 = vmatprep.subr.mxu0 0.0
        %430 = vmatpush1.msra.mxu0 0.0
        %431 = vmatprep.subr.mxu0 0.0
        %432 = vmatpush1.msra.mxu0 0.0
        %433 = vmatprep.subr.mxu0 0.0
        %434 = vmatpush1.msra.mxu0 0.0
        %435 = vmatprep.subr.mxu0 0.0
        %436 = vmatpush1.msra.mxu0 0.0
        %437 = vmatprep.subr.mxu0 0.0
        %438 = vmatpush1.msra.mxu0 0.0
        %439 = vmatprep.subr.mxu0 0.0
        %440 = vmatpush1.msra.mxu0 0.0
        %441 = vmatprep.subr.mxu0 0.0
        %442 = vmatpush1.msra.mxu0 0.0
        %443 = vmatprep.subr.mxu0 0.0
        %444 = vmatpush1.msra.mxu0 0.0
        %445 = vmatprep.subr.mxu0 0.0
        %446 = vmatpush1.msra.mxu0 0.0
        %447 = vmatprep.subr.mxu0 0.0
        %448 = vmatpush1.msra.mxu0 0.0
        %449 = vmatprep.subr.mxu0 0.0
        %450 = vmatpush1.msra.mxu0 0.0
        %451 = vmatprep.subr.mxu0 0.0
        %452 = vmatpush1.msra.mxu0 0.0
        %453 = vmatprep.subr.mxu0 0.0
        %454 = vmatpush1.msra.mxu0 0.0
        %455 = vmatprep.subr.mxu0 0.0
        %456 = vmatpush1.msra.mxu0 0.0
        %457 = vmatprep.subr.mxu0 0.0
        %458 = vmatpush1.msra.mxu0 0.0
        %459 = vmatprep.subr.mxu0 0.0
        %460 = vmatpush1.msra.mxu0 0.0
        %461 = vmatprep.subr.mxu0 0.0
        %462 = vmatpush1.msra.mxu0 0.0
        %463 = vmatprep.subr.mxu0 0.0
        %464 = vmatpush1.msra.mxu0 0.0
        %465 = vmatprep.subr.mxu0 0.0
        %466 = vmatpush1.msra.mxu0 0.0
        %467 = vmatprep.subr.mxu0 0.0
        %468 = vmatpush1.msra.mxu0 0.0
        %469 = vmatprep.mubr.f32.mxu0 0.0
        %470 = vmatmul.mubr.f32.gmra.mrb[0].mxu0 %v401
        %v471 = vpop.f32.mrb[0].mxu0
        %v472 = vadd.f32 0.0, %v471
        %v473 = vpop.f32.mrb[0].mxu0
        %474 = vmatprep.mubr.f32.mxu0 0.0
        %475 = vmatmul.mubr.f32.gmra.mrb[0].mxu0 %v403
        %v476 = vpop.f32.mrb[0].mxu0
        %v477 = vadd.f32 0.0, %v476
        %v478 = vpop.f32.mrb[0].mxu0
        %479 = vdwg.mxu0
        %v480 = vadd.f32 %v377, %v472
        %v481 = vadd.f32 %v382, %v477
        %482 = vst [vmem:[%s182] sm:$0xff] %v480
        %483 = vst [vmem:[%s182 + $0x8] sm:$0xff] %v481
        %v484 = vadd.f32 %v480, %v481
        %v485 = vrot.slane %v484, 4
        %v486 = vadd.f32 %v484, %v485
        %v487 = vrot.slane %v486, 2
        %v488 = vadd.f32 %v486, %v487
        %v489 = vrot.slane %v488, 1
        %v490 = vadd.f32 %v488, %v489
        %v491 = vmul.f32 %v480, %v480
        %v492 = vmul.f32 %v481, %v481
        %v493 = vadd.f32 %v491, %v492
        %v494 = vrot.slane %v493, 4
        %v495 = vadd.f32 %v493, %v494
        %v496 = vrot.slane %v495, 2
        %v497 = vadd.f32 %v495, %v496
        %v498 = vrot.slane %v497, 1
        %v499 = vadd.f32 %v497, %v498
        %vm500 = vcmask 1040384
        %v501 = vsel %vm500, %v490, %v499
        %502 = vst [vmem:[%s189] sm:$0x3] %v501
        %s503 = sand.u32 %s77, 1
        %s504 = scalar_lea.sflag [#allocation4], %s503
        %s505 = sand.u32 %s77, 1
        %s506 = smul.addr %s505, 16
        %s507 = scalar_lea.vmem [#allocation5], %s506
        %s508 = sand.u32 %s103, 1
        %s509 = scalar_lea.sflag [#allocation7], %s508
        %s510 = sand.u32 %s103, 1
        %s511 = smul.addr %s510, 2
        %s512 = scalar_lea.vmem [#allocation6], %s511
        // Predicated region
        $region33: #{tpu_custom_call.1} parent=27 // pred_check
          %p513 = pneg %p87
        $region34: #{tpu_custom_call.1} parent=27 // pred_check_branch
          %515 = sbr.rel (%p513) target = $region36
        $region35: #{tpu_custom_call.1} parent=27 // pred_region
          %s517 = ssub.s32 256, 256
          %518 = vsyncadd %s504, %s517
          %s519 = smul.addr %s22, 2
          %s520 = smul.addr %s519, 128
          %s521 = scalar_lea.hbm %s2, %s520
          %s522 = sshll.u32 %s507, 4
          %s523 = int_to_ptr.vmem [resolvable:$true] %s522
          %528 = dma.vmem_to_hbm [thread:$0]  %s523, 256, %s521, %s504, 128, 128, 8
        $region36: #{tpu_custom_call.1} parent=27 // pred_fallthru
          _
        // Predicated region
        $region37: #{tpu_custom_call.1} parent=27 // pred_check
          %p529 = pneg %p113
        $region38: #{tpu_custom_call.1} parent=27 // pred_check_branch
          %531 = sbr.rel (%p529) target = $region40
        $region39: #{tpu_custom_call.1} parent=27 // pred_region
          %s533 = ssub.s32 32, 32
          %534 = vsyncadd %s509, %s533
          %s535 = smul.addr %s22, 32
          %s536 = scalar_lea.hbm %s3, %s535
          %s538 = sshll.u32 %s512, 4
          %s539 = int_to_ptr.vmem [resolvable:$true] %s538
          %541 = dma.vmem_to_hbm [thread:$0]  %s539, 32, %s536, %s509
        $region40: #{tpu_custom_call.1} parent=27 // pred_fallthru
          _
      $region28: #{tpu_custom_call.1} parent=5 // pred_fallthru
        _
      %p542 = scmp.le.s32.totalorder 2, %s17
      // Predicated region
      $region41: #{tpu_custom_call.1} parent=5 // pred_check
        %p543 = pneg %p542
      $region42: #{tpu_custom_call.1} parent=5 // pred_check_branch
        %545 = sbr.rel (%p543) target = $region44
      $region43: #{tpu_custom_call.1} parent=5 // pred_region
        %s546 = ssub.s32 %s17, 2
        // Predicated region
        $region45: #{tpu_custom_call.1} parent=43 // pred_check
          %p547 = pneg %p93
        $region46: #{tpu_custom_call.1} parent=43 // pred_check_branch
          %549 = sbr.rel (%p547) target = $region48
        $region47: #{tpu_custom_call.1} parent=43 // pred_region
          %s550 = sand.u32 %s78, 1
          %s551 = scalar_lea.sflag [#allocation4], %s550
          %s552 = sand.u32 %s78, 1
          %s553 = smul.addr %s552, 16
          %s554 = scalar_lea.vmem [#allocation5], %s553
          %555 = dma.done %s551, 256
        $region48: #{tpu_custom_call.1} parent=43 // pred_fallthru
          _
        // Predicated region
        $region49: #{tpu_custom_call.1} parent=43 // pred_check
          %p556 = pneg %p119
        $region50: #{tpu_custom_call.1} parent=43 // pred_check_branch
          %558 = sbr.rel (%p556) target = $region52
        $region51: #{tpu_custom_call.1} parent=43 // pred_region
          %s559 = sand.u32 %s104, 1
          %s560 = scalar_lea.sflag [#allocation7], %s559
          %s561 = sand.u32 %s104, 1
          %s562 = smul.addr %s561, 2
          %s563 = scalar_lea.vmem [#allocation6], %s562
          %564 = dma.done %s560, 32
        $region52: #{tpu_custom_call.1} parent=43 // pred_fallthru
          _
      $region44: #{tpu_custom_call.1} parent=5 // pred_fallthru
        _
    $region6: #{tpu_custom_call.1} parent=1 // loop_footer
      %s21 = sadd.s32 1, %s17
    $region7: #{tpu_custom_call.1} parent=1 // loop_footer_branch
      %16 = sbr.rel target = $region3
    $region8: #{tpu_custom_call.1} parent=1 // loop_exit
      _
    %565 = vsyncpa [#allocation3], 1
    %s566 = scalar_lea.sflag [#allocation3], 1
    %567 = vsyncpa %s566, 1
    %568 = vsyncpa [#allocation4], 1
    %s569 = scalar_lea.sflag [#allocation4], 1
    %570 = vsyncpa %s569, 1
    %571 = vsyncpa [#allocation7], 1
    %s572 = scalar_lea.sflag [#allocation7], 1
    %573 = vsyncpa %s572, 1

</llo_original>
